<compile_context>
chip_gen: v6e
topology: v6e:2x2x1
jax: 0.10.0
libtpu: 0.0.40
codegen_flags: <defaults>
</compile_context>

<pallas_src>
import jax
import jax.numpy as jnp
from jax.experimental import pallas as pl
from jax.experimental.pallas import tpu as pltpu


def tower_kernel(x_ref, wih_ref, whh_ref, brnn_ref, wfc_ref, bfc_ref, out_ref):
    B, T, D = x_ref.shape
    H = whh_ref.shape[0]

    # ---- Hoisted input projection (not on the recurrence critical path) ----
    # (B, T, D) -> (B*T, D): tile-aligned collapse (T == 8 sublanes), so this
    # reshape is a layout no-op. One MXU push with M = B*T instead of T small
    # pushes, plus a single (hoisted) bias broadcast/add.
    x_flat = x_ref[...].reshape(B * T, D)
    xproj = (
        jnp.dot(x_flat, wih_ref[...], preferred_element_type=jnp.float32)
        + brnn_ref[...]
    ).reshape(B, T, H)

    whh = whh_ref[...]

    # ---- Recurrence: fully unrolled (T static), h carried in registers ----
    # Per step only: static slice of xproj + one (B,H)@(H,H) matmul + tanh.
    h = jnp.zeros((B, H), jnp.float32)
    for t in range(T):  # compile-time unroll; T is tiny and static
        h = jnp.tanh(
            xproj[:, t, :]
            + jnp.dot(h, whh, preferred_element_type=jnp.float32)
        )

    # ---- FC head on the final hidden state ----
    out_ref[...] = (
        jnp.dot(h, wfc_ref[...], preferred_element_type=jnp.float32)
        + bfc_ref[...]
    ).astype(out_ref.dtype)


def tower_forward(x_btd, w_ih, w_hh, b_ih, b_hh, w_fc, b_fc):
    """x_btd: (B, T, D) float32.  Weights in PyTorch convention:
       w_ih (H, D), w_hh (H, H), b_ih (H,), b_hh (H,), w_fc (H, H), b_fc (H,)."""
    B, T, D = x_btd.shape
    H = w_hh.shape[0]

    # Wrapper-side glue: transpose weights to (in, out) and fuse the two RNN
    # biases.  (No transpose / copy of x — it goes to the kernel as-is.)
    wih_t = jnp.transpose(w_ih)              # (D, H)
    whh_t = jnp.transpose(w_hh)              # (H, H)
    b_rnn = (b_ih + b_hh).reshape(1, H)      # (1, H)
    wfc_t = jnp.transpose(w_fc)              # (H, H)
    bfc = b_fc.reshape(1, H)                 # (1, H)

    vmem = pl.BlockSpec(memory_space=pltpu.MemorySpace.VMEM)
    return pl.pallas_call(
        tower_kernel,
        out_shape=jax.ShapeDtypeStruct((B, H), jnp.float32),
        in_specs=[vmem] * 6,                 # whole arrays resident in VMEM
        out_specs=vmem,
    )(x_btd, wih_t, whh_t, b_rnn, wfc_t, bfc)


def tower_reference(x_btd, w_ih, w_hh, b_ih, b_hh, w_fc, b_fc):
    B, T, D = x_btd.shape
    H = w_hh.shape[0]
    h = jnp.zeros((B, H), jnp.float32)
    for t in range(T):
        h = jnp.tanh(x_btd[:, t, :] @ w_ih.T + b_ih + h @ w_hh.T + b_hh)
    return h @ w_fc.T + b_fc


if __name__ == "__main__":
    # Small shapes consistent with the module (input_dim == hidden_dim).
    B, T, D, H = 8, 8, 32, 32

    key = jax.random.PRNGKey(0)
    kx, k1, k2, k3, k4, k5, k6 = jax.random.split(key, 7)

    x = jax.random.normal(kx, (B, T, D), jnp.float32)

    # Deterministic parameter init (uniform in +/- 1/sqrt(H), like PyTorch).
    bound = 1.0 / jnp.sqrt(jnp.float32(H))
    w_ih = jax.random.uniform(k1, (H, D), jnp.float32, -bound, bound)
    w_hh = jax.random.uniform(k2, (H, H), jnp.float32, -bound, bound)
    b_ih = jax.random.uniform(k3, (H,), jnp.float32, -bound, bound)
    b_hh = jax.random.uniform(k4, (H,), jnp.float32, -bound, bound)
    w_fc = jax.random.uniform(k5, (H, H), jnp.float32, -bound, bound)
    b_fc = jax.random.uniform(k6, (H,), jnp.float32, -bound, bound)

    out = tower_forward(x, w_ih, w_hh, b_ih, b_hh, w_fc, b_fc)
    out = jax.block_until_ready(out)

    ref = tower_reference(x, w_ih, w_hh, b_ih, b_hh, w_fc, b_fc)
    assert out.shape == (B, H)
    assert jnp.allclose(out, ref, atol=1e-5, rtol=1e-5), "mismatch vs reference"

    print("KERNEL_OK")
</pallas_src>

<mosaic_0001>
module attributes {stable_mosaic.version = 11 : i64} {
  func.func @tower_kernel(%arg0: memref<8x8x32xf32, #tpu.memory_space<vmem>>, %arg1: memref<32x32xf32, #tpu.memory_space<vmem>>, %arg2: memref<32x32xf32, #tpu.memory_space<vmem>>, %arg3: memref<1x32xf32, #tpu.memory_space<vmem>>, %arg4: memref<32x32xf32, #tpu.memory_space<vmem>>, %arg5: memref<1x32xf32, #tpu.memory_space<vmem>>, %arg6: memref<8x32xf32, #tpu.memory_space<vmem>>) attributes {dimension_semantics = [], scalar_prefetch = 0 : i64, scratch_operands = 0 : i64, tpu.core_type = #tpu.core_type<tc>} {
    %c0 = arith.constant 0 : index
    %c0_0 = arith.constant 0 : index
    %c0_1 = arith.constant 0 : index
    %0 = vector.load %arg0[%c0, %c0_0, %c0_1] : memref<8x8x32xf32, #tpu.memory_space<vmem>>, vector<8x8x32xf32>
    %1 = vector.shape_cast %0 : vector<8x8x32xf32> to vector<64x32xf32>
    %c0_2 = arith.constant 0 : index
    %c0_3 = arith.constant 0 : index
    %2 = vector.load %arg1[%c0_2, %c0_3] : memref<32x32xf32, #tpu.memory_space<vmem>>, vector<32x32xf32>
    %cst = arith.constant dense<0.000000e+00> : vector<64x32xf32>
    %3 = tpu.matmul %1, %2, %cst {dimension_numbers = #tpu.dot_dimension_numbers<[1], [0], [0], [1], [0, 0, 1, 1], [], []>} : vector<64x32xf32>, vector<32x32xf32>, vector<64x32xf32> -> vector<64x32xf32>
    %c0_4 = arith.constant 0 : index
    %c0_5 = arith.constant 0 : index
    %4 = vector.load %arg3[%c0_4, %c0_5] : memref<1x32xf32, #tpu.memory_space<vmem>>, vector<1x32xf32>
    %5 = vector.broadcast %4 : vector<1x32xf32> to vector<64x32xf32>
    %6 = arith.addf %3, %5 : vector<64x32xf32>
    %7 = vector.shape_cast %6 : vector<64x32xf32> to vector<8x8x32xf32>
    %c0_6 = arith.constant 0 : index
    %c0_7 = arith.constant 0 : index
    %8 = vector.load %arg2[%c0_6, %c0_7] : memref<32x32xf32, #tpu.memory_space<vmem>>, vector<32x32xf32>
    %cst_8 = arith.constant 0.000000e+00 : f32
    %9 = vector.broadcast %cst_8 : f32 to vector<8x32xf32>
    %10 = vector.extract_strided_slice %7 {offsets = [0, 0, 0], sizes = [8, 1, 32], strides = [1, 1, 1]} : vector<8x8x32xf32> to vector<8x1x32xf32>
    %11 = vector.shape_cast %10 : vector<8x1x32xf32> to vector<8x32xf32>
    %cst_9 = arith.constant dense<0.000000e+00> : vector<8x32xf32>
    %12 = tpu.matmul %9, %8, %cst_9 {dimension_numbers = #tpu.dot_dimension_numbers<[1], [0], [0], [1], [0, 0, 1, 1], [], []>} : vector<8x32xf32>, vector<32x32xf32>, vector<8x32xf32> -> vector<8x32xf32>
    %13 = arith.addf %11, %12 : vector<8x32xf32>
    %14 = math.tanh %13 : vector<8x32xf32>
    %15 = vector.extract_strided_slice %7 {offsets = [0, 1, 0], sizes = [8, 1, 32], strides = [1, 1, 1]} : vector<8x8x32xf32> to vector<8x1x32xf32>
    %16 = vector.shape_cast %15 : vector<8x1x32xf32> to vector<8x32xf32>
    %cst_10 = arith.constant dense<0.000000e+00> : vector<8x32xf32>
    %17 = tpu.matmul %14, %8, %cst_10 {dimension_numbers = #tpu.dot_dimension_numbers<[1], [0], [0], [1], [0, 0, 1, 1], [], []>} : vector<8x32xf32>, vector<32x32xf32>, vector<8x32xf32> -> vector<8x32xf32>
    %18 = arith.addf %16, %17 : vector<8x32xf32>
    %19 = math.tanh %18 : vector<8x32xf32>
    %20 = vector.extract_strided_slice %7 {offsets = [0, 2, 0], sizes = [8, 1, 32], strides = [1, 1, 1]} : vector<8x8x32xf32> to vector<8x1x32xf32>
    %21 = vector.shape_cast %20 : vector<8x1x32xf32> to vector<8x32xf32>
    %cst_11 = arith.constant dense<0.000000e+00> : vector<8x32xf32>
    %22 = tpu.matmul %19, %8, %cst_11 {dimension_numbers = #tpu.dot_dimension_numbers<[1], [0], [0], [1], [0, 0, 1, 1], [], []>} : vector<8x32xf32>, vector<32x32xf32>, vector<8x32xf32> -> vector<8x32xf32>
    %23 = arith.addf %21, %22 : vector<8x32xf32>
    %24 = math.tanh %23 : vector<8x32xf32>
    %25 = vector.extract_strided_slice %7 {offsets = [0, 3, 0], sizes = [8, 1, 32], strides = [1, 1, 1]} : vector<8x8x32xf32> to vector<8x1x32xf32>
    %26 = vector.shape_cast %25 : vector<8x1x32xf32> to vector<8x32xf32>
    %cst_12 = arith.constant dense<0.000000e+00> : vector<8x32xf32>
    %27 = tpu.matmul %24, %8, %cst_12 {dimension_numbers = #tpu.dot_dimension_numbers<[1], [0], [0], [1], [0, 0, 1, 1], [], []>} : vector<8x32xf32>, vector<32x32xf32>, vector<8x32xf32> -> vector<8x32xf32>
    %28 = arith.addf %26, %27 : vector<8x32xf32>
    %29 = math.tanh %28 : vector<8x32xf32>
    %30 = vector.extract_strided_slice %7 {offsets = [0, 4, 0], sizes = [8, 1, 32], strides = [1, 1, 1]} : vector<8x8x32xf32> to vector<8x1x32xf32>
    %31 = vector.shape_cast %30 : vector<8x1x32xf32> to vector<8x32xf32>
    %cst_13 = arith.constant dense<0.000000e+00> : vector<8x32xf32>
    %32 = tpu.matmul %29, %8, %cst_13 {dimension_numbers = #tpu.dot_dimension_numbers<[1], [0], [0], [1], [0, 0, 1, 1], [], []>} : vector<8x32xf32>, vector<32x32xf32>, vector<8x32xf32> -> vector<8x32xf32>
    %33 = arith.addf %31, %32 : vector<8x32xf32>
    %34 = math.tanh %33 : vector<8x32xf32>
    %35 = vector.extract_strided_slice %7 {offsets = [0, 5, 0], sizes = [8, 1, 32], strides = [1, 1, 1]} : vector<8x8x32xf32> to vector<8x1x32xf32>
    %36 = vector.shape_cast %35 : vector<8x1x32xf32> to vector<8x32xf32>
    %cst_14 = arith.constant dense<0.000000e+00> : vector<8x32xf32>
    %37 = tpu.matmul %34, %8, %cst_14 {dimension_numbers = #tpu.dot_dimension_numbers<[1], [0], [0], [1], [0, 0, 1, 1], [], []>} : vector<8x32xf32>, vector<32x32xf32>, vector<8x32xf32> -> vector<8x32xf32>
    %38 = arith.addf %36, %37 : vector<8x32xf32>
    %39 = math.tanh %38 : vector<8x32xf32>
    %40 = vector.extract_strided_slice %7 {offsets = [0, 6, 0], sizes = [8, 1, 32], strides = [1, 1, 1]} : vector<8x8x32xf32> to vector<8x1x32xf32>
    %41 = vector.shape_cast %40 : vector<8x1x32xf32> to vector<8x32xf32>
    %cst_15 = arith.constant dense<0.000000e+00> : vector<8x32xf32>
    %42 = tpu.matmul %39, %8, %cst_15 {dimension_numbers = #tpu.dot_dimension_numbers<[1], [0], [0], [1], [0, 0, 1, 1], [], []>} : vector<8x32xf32>, vector<32x32xf32>, vector<8x32xf32> -> vector<8x32xf32>
    %43 = arith.addf %41, %42 : vector<8x32xf32>
    %44 = math.tanh %43 : vector<8x32xf32>
    %45 = vector.extract_strided_slice %7 {offsets = [0, 7, 0], sizes = [8, 1, 32], strides = [1, 1, 1]} : vector<8x8x32xf32> to vector<8x1x32xf32>
    %46 = vector.shape_cast %45 : vector<8x1x32xf32> to vector<8x32xf32>
    %cst_16 = arith.constant dense<0.000000e+00> : vector<8x32xf32>
    %47 = tpu.matmul %44, %8, %cst_16 {dimension_numbers = #tpu.dot_dimension_numbers<[1], [0], [0], [1], [0, 0, 1, 1], [], []>} : vector<8x32xf32>, vector<32x32xf32>, vector<8x32xf32> -> vector<8x32xf32>
    %48 = arith.addf %46, %47 : vector<8x32xf32>
    %49 = math.tanh %48 : vector<8x32xf32>
    %c0_17 = arith.constant 0 : index
    %c0_18 = arith.constant 0 : index
    %50 = vector.load %arg4[%c0_17, %c0_18] : memref<32x32xf32, #tpu.memory_space<vmem>>, vector<32x32xf32>
    %cst_19 = arith.constant dense<0.000000e+00> : vector<8x32xf32>
    %51 = tpu.matmul %49, %50, %cst_19 {dimension_numbers = #tpu.dot_dimension_numbers<[1], [0], [0], [1], [0, 0, 1, 1], [], []>} : vector<8x32xf32>, vector<32x32xf32>, vector<8x32xf32> -> vector<8x32xf32>
    %c0_20 = arith.constant 0 : index
    %c0_21 = arith.constant 0 : index
    %52 = vector.load %arg5[%c0_20, %c0_21] : memref<1x32xf32, #tpu.memory_space<vmem>>, vector<1x32xf32>
    %53 = vector.broadcast %52 : vector<1x32xf32> to vector<8x32xf32>
    %54 = arith.addf %51, %53 : vector<8x32xf32>
    %c0_22 = arith.constant 0 : index
    %c0_23 = arith.constant 0 : index
    %55 = vector.load %arg6[%c0_22, %c0_23] : memref<8x32xf32, #tpu.memory_space<vmem>>, vector<8x32xf32>
    tpu.vector_store %arg6[%c0_22, %c0_23], %54 {strides = array<i32>} : memref<8x32xf32, #tpu.memory_space<vmem>>, vector<8x32xf32>,
    return
  }
}

</mosaic_0001>

<llo_original>
// kernel: tpu_custom_call.1
$region0: #{tpu_custom_call.1}
  #allocation0 [shape = 'u32[]', space=smem, size = 0x4, offset = 0x4, fixed_abs, tag = 'smem constant byte address 0x4 - core index']
  #allocation1 [shape = 'u32[144,128]{1,0:T(1,128)}', space=vmem, size = 0x12000, scoped, tag = 'internal scratch']
  %s0 = inlined_call_operand.hbm [shape: f32[8,8,32], index: 0, kind: input, shape index: {}]
  %s1 = inlined_call_operand.hbm [shape: f32[32,32], index: 1, kind: input, shape index: {}]
  %s2 = inlined_call_operand.hbm [shape: f32[32,32], index: 2, kind: input, shape index: {}]
  %s3 = inlined_call_operand.vmem [shape: f32[1,32], index: 3, kind: input, shape index: {}]
  %s4 = inlined_call_operand.hbm [shape: f32[32,32], index: 4, kind: input, shape index: {}]
  %s5 = inlined_call_operand.vmem [shape: f32[1,32], index: 5, kind: input, shape index: {}]
  %s6 = inlined_call_operand.hbm [shape: f32[8,32], index: 6, kind: output, shape index: {}]
  %s7 = sld [smem:[#allocation0]]
  $region50: #{tpu_custom_call.1} parent=0
    _
  %s9 = ssub.s32 1, %s7
  %s10 = scalar_select 0, %s9, %s7
  $region1: #{tpu_custom_call.1} parent=0
    #allocation2 [shape = 'u8[32768]{0}', space=vmem, size = 0x8000, scoped, tag = 'input window, operand 0, single buffered']
    #allocation3 [shape = 's32[1]{0}', space=sflag, size = 0x4, scoped, tag = 'scoped memory for tpu_custom_call.1']
    #allocation4 [shape = 's32[1]{0}', space=sflag, size = 0x4, scoped, tag = 'scoped memory for tpu_custom_call.1']
    #allocation5 [shape = 'u8[16384]{0}', space=vmem, size = 0x4000, scoped, tag = 'input window, operand 1, single buffered']
    #allocation6 [shape = 's32[1]{0}', space=sflag, size = 0x4, scoped, tag = 'scoped memory for tpu_custom_call.1']
    #allocation7 [shape = 'u8[16384]{0}', space=vmem, size = 0x4000, scoped, tag = 'input window, operand 2, single buffered']
    #allocation8 [shape = 'u8[16384]{0}', space=vmem, size = 0x4000, scoped, tag = 'input window, operand 4, single buffered']
    #allocation9 [shape = 's32[1]{0}', space=sflag, size = 0x4, scoped, tag = 'scoped memory for tpu_custom_call.1']
    #allocation10 [shape = 'u8[4096]{0}', space=vmem, size = 0x1000, scoped, tag = 'output window, operand 0, single buffered']
    %11 = vsyncpa [#allocation3], 0
    %12 = vsyncpa [#allocation6], 0
    %13 = vsyncpa [#allocation9], 0
    %14 = vsyncpa [#allocation4], 0
    // Predicated region
    $region2: #{tpu_custom_call.1} parent=1 // pred_check
      _
    $region3: #{tpu_custom_call.1} parent=1 // pred_check_branch
      %16 = sbr.rel (0) target = $region5
    $region4: #{tpu_custom_call.1} parent=1 // pred_region
      %s18 = ssub.s32 1024, 1024
      %19 = vsyncadd [#allocation3], %s18
      %s20 = sshll.u32 [#allocation2], 4
      %s21 = int_to_ptr.vmem [resolvable:$true] %s20
      %26 = dma.hbm_to_vmem [thread:$0]  %s0, 1024, %s21, [#allocation3], 128, 128, 8
    $region5: #{tpu_custom_call.1} parent=1 // pred_fallthru
      _
    // Predicated region
    $region6: #{tpu_custom_call.1} parent=1 // pred_check
      _
    $region7: #{tpu_custom_call.1} parent=1 // pred_check_branch
      %28 = sbr.rel (0) target = $region9
    $region8: #{tpu_custom_call.1} parent=1 // pred_region
      %s30 = ssub.s32 512, 512
      %31 = vsyncadd [#allocation6], %s30
      %s32 = sshll.u32 [#allocation5], 4
      %s33 = int_to_ptr.vmem [resolvable:$true] %s32
      %38 = dma.hbm_to_vmem [thread:$0]  %s1, 512, %s33, [#allocation6], 128, 128, 8
    $region9: #{tpu_custom_call.1} parent=1 // pred_fallthru
      _
    // Predicated region
    $region10: #{tpu_custom_call.1} parent=1 // pred_check
      _
    $region11: #{tpu_custom_call.1} parent=1 // pred_check_branch
      %40 = sbr.rel (0) target = $region13
    $region12: #{tpu_custom_call.1} parent=1 // pred_region
      %s42 = ssub.s32 512, 512
      %43 = vsyncadd [#allocation6], %s42
      %s44 = sshll.u32 [#allocation7], 4
      %s45 = int_to_ptr.vmem [resolvable:$true] %s44
      %50 = dma.hbm_to_vmem [thread:$0]  %s2, 512, %s45, [#allocation6], 128, 128, 8
    $region13: #{tpu_custom_call.1} parent=1 // pred_fallthru
      _
    // Predicated region
    $region14: #{tpu_custom_call.1} parent=1 // pred_check
      _
    $region15: #{tpu_custom_call.1} parent=1 // pred_check_branch
      %52 = sbr.rel (0) target = $region17
    $region16: #{tpu_custom_call.1} parent=1 // pred_region
      _
    $region17: #{tpu_custom_call.1} parent=1 // pred_fallthru
      _
    // Predicated region
    $region18: #{tpu_custom_call.1} parent=1 // pred_check
      _
    $region19: #{tpu_custom_call.1} parent=1 // pred_check_branch
      %54 = sbr.rel (0) target = $region21
    $region20: #{tpu_custom_call.1} parent=1 // pred_region
      %s56 = ssub.s32 512, 512
      %57 = vsyncadd [#allocation9], %s56
      %s58 = sshll.u32 [#allocation8], 4
      %s59 = int_to_ptr.vmem [resolvable:$true] %s58
      %64 = dma.hbm_to_vmem [thread:$0]  %s4, 512, %s59, [#allocation9], 128, 128, 8
    $region21: #{tpu_custom_call.1} parent=1 // pred_fallthru
      _
    // Predicated region
    $region22: #{tpu_custom_call.1} parent=1 // pred_check
      _
    $region23: #{tpu_custom_call.1} parent=1 // pred_check_branch
      %66 = sbr.rel (0) target = $region25
    $region24: #{tpu_custom_call.1} parent=1 // pred_region
      _
    $region25: #{tpu_custom_call.1} parent=1 // pred_fallthru
      _
    // Predicated region
    $region26: #{tpu_custom_call.1} parent=1 // pred_check
      _
    $region27: #{tpu_custom_call.1} parent=1 // pred_check_branch
      %68 = sbr.rel (0) target = $region29
    $region28: #{tpu_custom_call.1} parent=1 // pred_region
      %69 = dma.done [#allocation3], 1024
    $region29: #{tpu_custom_call.1} parent=1 // pred_fallthru
      _
    // Predicated region
    $region30: #{tpu_custom_call.1} parent=1 // pred_check
      _
    $region31: #{tpu_custom_call.1} parent=1 // pred_check_branch
      %71 = sbr.rel (0) target = $region33
    $region32: #{tpu_custom_call.1} parent=1 // pred_region
      %72 = dma.done [#allocation6], 512
    $region33: #{tpu_custom_call.1} parent=1 // pred_fallthru
      _
    // Predicated region
    $region34: #{tpu_custom_call.1} parent=1 // pred_check
      _
    $region35: #{tpu_custom_call.1} parent=1 // pred_check_branch
      %74 = sbr.rel (0) target = $region37
    $region36: #{tpu_custom_call.1} parent=1 // pred_region
      %75 = dma.done [#allocation6], 512
    $region37: #{tpu_custom_call.1} parent=1 // pred_fallthru
      _
    // Predicated region
    $region38: #{tpu_custom_call.1} parent=1 // pred_check
      _
    $region39: #{tpu_custom_call.1} parent=1 // pred_check_branch
      %77 = sbr.rel (0) target = $region41
    $region40: #{tpu_custom_call.1} parent=1 // pred_region
      %78 = dma.done [#allocation9], 512
    $region41: #{tpu_custom_call.1} parent=1 // pred_fallthru
      _
    %v79 = vld [vmem:[#allocation2] sm:$0xff]
    %v80 = vld [vmem:[#allocation2 + $0x8] sm:$0xff]
    %v81 = vld [vmem:[#allocation2 + $0x10] sm:$0xff]
    %v82 = vld [vmem:[#allocation2 + $0x18] sm:$0xff]
    %v83 = vld [vmem:[#allocation2 + $0x20] sm:$0xff]
    %v84 = vld [vmem:[#allocation2 + $0x28] sm:$0xff]
    %v85 = vld [vmem:[#allocation2 + $0x30] sm:$0xff]
    %v86 = vld [vmem:[#allocation2 + $0x38] sm:$0xff]
    %v87 = vld [vmem:[#allocation5] sm:$0xff]
    %v88 = vld [vmem:[#allocation5 + $0x8] sm:$0xff]
    %v89 = vld [vmem:[#allocation5 + $0x10] sm:$0xff]
    %v90 = vld [vmem:[#allocation5 + $0x18] sm:$0xff]
    %v91 = vld [vmem:[%s3] sm:$0x1]
    %v93 = vlaneseq
    %v94 = vshrl.u32 %v93, 7
    %v95 = vsub.s32 0, %v94
    %v96 = vrot.slane %v91, %v95
    %vm98 = vcmask 261120
    %v100 = vsel %vm98, %v79, 0
    %v103 = vsel %vm98, %v80, 0
    %v106 = vsel %vm98, %v81, 0
    %v109 = vsel %vm98, %v82, 0
    %v112 = vsel %vm98, %v83, 0
    %v115 = vsel %vm98, %v84, 0
    %v118 = vsel %vm98, %v85, 0
    %v121 = vsel %vm98, %v86, 0
    %123 = vmatprep.subr.mxu0 0.0
    %124 = vmatpush1.msra.mxu0 0.0
    %125 = vmatprep.subr.mxu0 0.0
    %126 = vmatpush1.msra.mxu0 0.0
    %127 = vmatprep.subr.mxu0 0.0
    %128 = vmatpush1.msra.mxu0 0.0
    %129 = vmatprep.subr.mxu0 0.0
    %130 = vmatpush1.msra.mxu0 0.0
    %131 = vmatprep.subr.mxu0 0.0
    %132 = vmatpush1.msra.mxu0 0.0
    %133 = vmatprep.subr.mxu0 0.0
    %134 = vmatpush1.msra.mxu0 0.0
    %135 = vmatprep.subr.mxu0 0.0
    %136 = vmatpush1.msra.mxu0 0.0
    %137 = vmatprep.subr.mxu0 0.0
    %138 = vmatpush1.msra.mxu0 0.0
    %139 = vmatprep.subr.mxu0 0.0
    %140 = vmatpush1.msra.mxu0 0.0
    %141 = vmatprep.subr.mxu0 0.0
    %142 = vmatpush1.msra.mxu0 0.0
    %143 = vmatprep.subr.mxu0 0.0
    %144 = vmatpush1.msra.mxu0 0.0
    %145 = vmatprep.subr.mxu0 0.0
    %146 = vmatpush1.msra.mxu0 0.0
    %147 = vmatprep.subr.mxu0 0.0
    %148 = vmatpush1.msra.mxu0 %v90
    %149 = vmatprep.subr.mxu0 0.0
    %150 = vmatpush1.msra.mxu0 %v89
    %151 = vmatprep.subr.mxu0 0.0
    %152 = vmatpush1.msra.mxu0 %v88
    %153 = vmatprep.subr.mxu0 0.0
    %154 = vmatpush1.msra.mxu0 %v87
    %155 = vmatprep.subr.mxu0 0.0
    %156 = vmatpush2.msra.mxu0 0.0
    %157 = vmatprep.subr.mxu0 0.0
    %158 = vmatpush2.msra.mxu0 0.0
    %159 = vmatprep.subr.mxu0 0.0
    %160 = vmatpush2.msra.mxu0 0.0
    %161 = vmatprep.subr.mxu0 0.0
    %162 = vmatpush2.msra.mxu0 0.0
    %163 = vmatprep.subr.mxu0 0.0
    %164 = vmatpush2.msra.mxu0 0.0
    %165 = vmatprep.subr.mxu0 0.0
    %166 = vmatpush2.msra.mxu0 0.0
    %167 = vmatprep.subr.mxu0 0.0
    %168 = vmatpush2.msra.mxu0 0.0
    %169 = vmatprep.subr.mxu0 0.0
    %170 = vmatpush2.msra.mxu0 0.0
    %171 = vmatprep.subr.mxu0 0.0
    %172 = vmatpush2.msra.mxu0 0.0
    %173 = vmatprep.subr.mxu0 0.0
    %174 = vmatpush2.msra.mxu0 0.0
    %175 = vmatprep.subr.mxu0 0.0
    %176 = vmatpush2.msra.mxu0 0.0
    %177 = vmatprep.subr.mxu0 0.0
    %178 = vmatpush2.msra.mxu0 0.0
    %179 = vmatprep.subr.mxu0 0.0
    %180 = vmatpush2.msra.mxu0 0.0
    %181 = vmatprep.subr.mxu0 0.0
    %182 = vmatpush2.msra.mxu0 0.0
    %183 = vmatprep.subr.mxu0 0.0
    %184 = vmatpush2.msra.mxu0 0.0
    %185 = vmatprep.subr.mxu0 0.0
    %186 = vmatpush2.msra.mxu0 0.0
    %187 = vmatprep.mubr.f32.mxu0 0.0
    %188 = vmatmul.mubr.f32.gmra.mxu0 %v100
    %v189 = vpop.f32.mrf.mxu0
    %v190 = vadd.f32 %v96, %v189
    %v191 = vpop.f32.mrf.mxu0
    %192 = vmatprep.mubr.f32.mxu0 0.0
    %193 = vmatmul.mubr.f32.gmra.mxu0 %v103
    %v194 = vpop.f32.mrf.mxu0
    %v195 = vadd.f32 %v96, %v194
    %v196 = vpop.f32.mrf.mxu0
    %197 = vmatprep.mubr.f32.mxu0 0.0
    %198 = vmatmul.mubr.f32.gmra.mxu0 %v106
    %v199 = vpop.f32.mrf.mxu0
    %v200 = vadd.f32 %v96, %v199
    %v201 = vpop.f32.mrf.mxu0
    %202 = vmatprep.mubr.f32.mxu0 0.0
    %203 = vmatmul.mubr.f32.gmra.mxu0 %v109
    %v204 = vpop.f32.mrf.mxu0
    %v205 = vadd.f32 %v96, %v204
    %v206 = vpop.f32.mrf.mxu0
    %207 = vmatprep.mubr.f32.mxu0 0.0
    %208 = vmatmul.mubr.f32.gmra.mxu0 %v112
    %v209 = vpop.f32.mrf.mxu0
    %v210 = vadd.f32 %v96, %v209
    %v211 = vpop.f32.mrf.mxu0
    %212 = vmatprep.mubr.f32.mxu0 0.0
    %213 = vmatmul.mubr.f32.gmra.mxu0 %v115
    %v214 = vpop.f32.mrf.mxu0
    %v215 = vadd.f32 %v96, %v214
    %v216 = vpop.f32.mrf.mxu0
    %217 = vmatprep.mubr.f32.mxu0 0.0
    %218 = vmatmul.mubr.f32.gmra.mxu0 %v118
    %v219 = vpop.f32.mrf.mxu0
    %v220 = vadd.f32 %v96, %v219
    %v221 = vpop.f32.mrf.mxu0
    %222 = vmatprep.mubr.f32.mxu0 0.0
    %223 = vmatmul.mubr.f32.gmra.mxu0 %v121
    %v224 = vpop.f32.mrf.mxu0
    %v225 = vadd.f32 %v96, %v224
    %v226 = vpop.f32.mrf.mxu0
    %227 = vdwg.mxu0
    %v228 = vld [vmem:[#allocation7] sm:$0xff]
    %v229 = vld [vmem:[#allocation7 + $0x8] sm:$0xff]
    %v230 = vld [vmem:[#allocation7 + $0x10] sm:$0xff]
    %v231 = vld [vmem:[#allocation7 + $0x18] sm:$0xff]
    %v233 = vsel %vm98, 0.0, 0
    %235 = vmatprep.subr.mxu0 0.0
    %236 = vmatpush1.msra.mxu0 0.0
    %237 = vmatprep.subr.mxu0 0.0
    %238 = vmatpush1.msra.mxu0 0.0
    %239 = vmatprep.subr.mxu0 0.0
    %240 = vmatpush1.msra.mxu0 0.0
    %241 = vmatprep.subr.mxu0 0.0
    %242 = vmatpush1.msra.mxu0 0.0
    %243 = vmatprep.subr.mxu0 0.0
    %244 = vmatpush1.msra.mxu0 0.0
    %245 = vmatprep.subr.mxu0 0.0
    %246 = vmatpush1.msra.mxu0 0.0
    %247 = vmatprep.subr.mxu0 0.0
    %248 = vmatpush1.msra.mxu0 0.0
    %249 = vmatprep.subr.mxu0 0.0
    %250 = vmatpush1.msra.mxu0 0.0
    %251 = vmatprep.subr.mxu0 0.0
    %252 = vmatpush1.msra.mxu0 0.0
    %253 = vmatprep.subr.mxu0 0.0
    %254 = vmatpush1.msra.mxu0 0.0
    %255 = vmatprep.subr.mxu0 0.0
    %256 = vmatpush1.msra.mxu0 0.0
    %257 = vmatprep.subr.mxu0 0.0
    %258 = vmatpush1.msra.mxu0 0.0
    %259 = vmatprep.subr.mxu0 0.0
    %260 = vmatpush1.msra.mxu0 %v231
    %261 = vmatprep.subr.mxu0 0.0
    %262 = vmatpush1.msra.mxu0 %v230
    %263 = vmatprep.subr.mxu0 0.0
    %264 = vmatpush1.msra.mxu0 %v229
    %265 = vmatprep.subr.mxu0 0.0
    %266 = vmatpush1.msra.mxu0 %v228
    %267 = vmatprep.subr.mxu0 0.0
    %268 = vmatpush2.msra.mxu0 0.0
    %269 = vmatprep.subr.mxu0 0.0
    %270 = vmatpush2.msra.mxu0 0.0
    %271 = vmatprep.subr.mxu0 0.0
    %272 = vmatpush2.msra.mxu0 0.0
    %273 = vmatprep.subr.mxu0 0.0
    %274 = vmatpush2.msra.mxu0 0.0
    %275 = vmatprep.subr.mxu0 0.0
    %276 = vmatpush2.msra.mxu0 0.0
    %277 = vmatprep.subr.mxu0 0.0
    %278 = vmatpush2.msra.mxu0 0.0
    %279 = vmatprep.subr.mxu0 0.0
    %280 = vmatpush2.msra.mxu0 0.0
    %281 = vmatprep.subr.mxu0 0.0
    %282 = vmatpush2.msra.mxu0 0.0
    %283 = vmatprep.subr.mxu0 0.0
    %284 = vmatpush2.msra.mxu0 0.0
    %285 = vmatprep.subr.mxu0 0.0
    %286 = vmatpush2.msra.mxu0 0.0
    %287 = vmatprep.subr.mxu0 0.0
    %288 = vmatpush2.msra.mxu0 0.0
    %289 = vmatprep.subr.mxu0 0.0
    %290 = vmatpush2.msra.mxu0 0.0
    %291 = vmatprep.subr.mxu0 0.0
    %292 = vmatpush2.msra.mxu0 0.0
    %293 = vmatprep.subr.mxu0 0.0
    %294 = vmatpush2.msra.mxu0 0.0
    %295 = vmatprep.subr.mxu0 0.0
    %296 = vmatpush2.msra.mxu0 0.0
    %297 = vmatprep.subr.mxu0 0.0
    %298 = vmatpush2.msra.mxu0 0.0
    %299 = vmatprep.mubr.f32.mxu0 0.0
    %300 = vmatmul.mubr.f32.gmra.mxu0 %v233
    %v301 = vpop.f32.mrf.mxu0
    %v302 = vadd.f32 0.0, %v301
    %v303 = vpop.f32.mrf.mxu0
    %304 = vdwg.mxu0
    %v306 = vrot.slane %v302, 1
    %v307 = vrot.slane %v302, 2
    %v308 = vrot.slane %v302, 3
    %v309 = vrot.slane %v302, 4
    %v310 = vrot.slane %v302, 5
    %v311 = vrot.slane %v302, 6
    %v312 = vrot.slane %v302, 7
    %v321 = vadd.f32 %v190, %v302
    %v322 = vadd.f32 %v195, %v306
    %v323 = vadd.f32 %v200, %v307
    %v324 = vadd.f32 %v205, %v308
    %v325 = vadd.f32 %v210, %v309
    %v326 = vadd.f32 %v215, %v310
    %v327 = vadd.f32 %v220, %v311
    %v328 = vadd.f32 %v225, %v312
    %v329 = vtanh.pop %v321
    %v330 = vtanh.pop %v322
    %v331 = vtanh.pop %v323
    %v332 = vtanh.pop %v324
    %v333 = vtanh.pop %v325
    %v334 = vtanh.pop %v326
    %v335 = vtanh.pop %v327
    %v336 = vtanh.pop %v328
    %v345 = vrot.slane %v330, 7
    %vm346 = vcmask 1041409
    %v347 = vsel %vm346, %v345, %v329
    %v348 = vrot.slane %v331, 6
    %vm349 = vcmask 1042434
    %v350 = vsel %vm349, %v348, %v347
    %v351 = vrot.slane %v332, 5
    %vm352 = vcmask 1043459
    %v353 = vsel %vm352, %v351, %v350
    %v354 = vrot.slane %v333, 4
    %vm355 = vcmask 1044484
    %v356 = vsel %vm355, %v354, %v353
    %v357 = vrot.slane %v334, 3
    %vm358 = vcmask 1045509
    %v359 = vsel %vm358, %v357, %v356
    %v360 = vrot.slane %v335, 2
    %vm361 = vcmask 1046534
    %v362 = vsel %vm361, %v360, %v359
    %v363 = vrot.slane %v336, 1
    %vm364 = vcmask 1047559
    %v365 = vsel %vm364, %v363, %v362
    %v366 = vsel %vm98, %v365, 0
    %368 = vmatprep.subr.mxu0 0.0
    %369 = vmatpush1.msra.mxu0 0.0
    %370 = vmatprep.subr.mxu0 0.0
    %371 = vmatpush1.msra.mxu0 0.0
    %372 = vmatprep.subr.mxu0 0.0
    %373 = vmatpush1.msra.mxu0 0.0
    %374 = vmatprep.subr.mxu0 0.0
    %375 = vmatpush1.msra.mxu0 0.0
    %376 = vmatprep.subr.mxu0 0.0
    %377 = vmatpush1.msra.mxu0 0.0
    %378 = vmatprep.subr.mxu0 0.0
    %379 = vmatpush1.msra.mxu0 0.0
    %380 = vmatprep.subr.mxu0 0.0
    %381 = vmatpush1.msra.mxu0 0.0
    %382 = vmatprep.subr.mxu0 0.0
    %383 = vmatpush1.msra.mxu0 0.0
    %384 = vmatprep.subr.mxu0 0.0
    %385 = vmatpush1.msra.mxu0 0.0
    %386 = vmatprep.subr.mxu0 0.0
    %387 = vmatpush1.msra.mxu0 0.0
    %388 = vmatprep.subr.mxu0 0.0
    %389 = vmatpush1.msra.mxu0 0.0
    %390 = vmatprep.subr.mxu0 0.0
    %391 = vmatpush1.msra.mxu0 0.0
    %392 = vmatprep.subr.mxu0 0.0
    %393 = vmatpush1.msra.mxu0 %v231
    %394 = vmatprep.subr.mxu0 0.0
    %395 = vmatpush1.msra.mxu0 %v230
    %396 = vmatprep.subr.mxu0 0.0
    %397 = vmatpush1.msra.mxu0 %v229
    %398 = vmatprep.subr.mxu0 0.0
    %399 = vmatpush1.msra.mxu0 %v228
    %400 = vmatprep.subr.mxu0 0.0
    %401 = vmatpush2.msra.mxu0 0.0
    %402 = vmatprep.subr.mxu0 0.0
    %403 = vmatpush2.msra.mxu0 0.0
    %404 = vmatprep.subr.mxu0 0.0
    %405 = vmatpush2.msra.mxu0 0.0
    %406 = vmatprep.subr.mxu0 0.0
    %407 = vmatpush2.msra.mxu0 0.0
    %408 = vmatprep.subr.mxu0 0.0
    %409 = vmatpush2.msra.mxu0 0.0
    %410 = vmatprep.subr.mxu0 0.0
    %411 = vmatpush2.msra.mxu0 0.0
    %412 = vmatprep.subr.mxu0 0.0
    %413 = vmatpush2.msra.mxu0 0.0
    %414 = vmatprep.subr.mxu0 0.0
    %415 = vmatpush2.msra.mxu0 0.0
    %416 = vmatprep.subr.mxu0 0.0
    %417 = vmatpush2.msra.mxu0 0.0
    %418 = vmatprep.subr.mxu0 0.0
    %419 = vmatpush2.msra.mxu0 0.0
    %420 = vmatprep.subr.mxu0 0.0
    %421 = vmatpush2.msra.mxu0 0.0
    %422 = vmatprep.subr.mxu0 0.0
    %423 = vmatpush2.msra.mxu0 0.0
    %424 = vmatprep.subr.mxu0 0.0
    %425 = vmatpush2.msra.mxu0 0.0
    %426 = vmatprep.subr.mxu0 0.0
    %427 = vmatpush2.msra.mxu0 0.0
    %428 = vmatprep.subr.mxu0 0.0
    %429 = vmatpush2.msra.mxu0 0.0
    %430 = vmatprep.subr.mxu0 0.0
    %431 = vmatpush2.msra.mxu0 0.0
    %432 = vmatprep.mubr.f32.mxu0 0.0
    %433 = vmatmul.mubr.f32.gmra.mxu0 %v366
    %v434 = vpop.f32.mrf.mxu0
    %v435 = vadd.f32 0.0, %v434
    %v436 = vpop.f32.mrf.mxu0
    %437 = vdwg.mxu0
    %v439 = vrot.slane %v435, 7
    %v440 = vrot.slane %v435, 1
    %v441 = vrot.slane %v435, 2
    %v442 = vrot.slane %v435, 3
    %v443 = vrot.slane %v435, 4
    %v444 = vrot.slane %v435, 5
    %v445 = vrot.slane %v435, 6
    %v454 = vadd.f32 %v190, %v439
    %v455 = vadd.f32 %v195, %v435
    %v456 = vadd.f32 %v200, %v440
    %v457 = vadd.f32 %v205, %v441
    %v458 = vadd.f32 %v210, %v442
    %v459 = vadd.f32 %v215, %v443
    %v460 = vadd.f32 %v220, %v444
    %v461 = vadd.f32 %v225, %v445
    %v462 = vtanh.pop %v454
    %v463 = vtanh.pop %v455
    %v464 = vtanh.pop %v456
    %v465 = vtanh.pop %v457
    %v466 = vtanh.pop %v458
    %v467 = vtanh.pop %v459
    %v468 = vtanh.pop %v460
    %v469 = vtanh.pop %v461
    %v478 = vrot.slane %v462, 1
    %v479 = vsel %vm346, %v463, %v478
    %v480 = vrot.slane %v464, 7
    %v481 = vsel %vm349, %v480, %v479
    %v482 = vrot.slane %v465, 6
    %v483 = vsel %vm352, %v482, %v481
    %v484 = vrot.slane %v466, 5
    %v485 = vsel %vm355, %v484, %v483
    %v486 = vrot.slane %v467, 4
    %v487 = vsel %vm358, %v486, %v485
    %v488 = vrot.slane %v468, 3
    %v489 = vsel %vm361, %v488, %v487
    %v490 = vrot.slane %v469, 2
    %v491 = vsel %vm364, %v490, %v489
    %v492 = vsel %vm98, %v491, 0
    %494 = vmatprep.subr.mxu0 0.0
    %495 = vmatpush1.msra.mxu0 0.0
    %496 = vmatprep.subr.mxu0 0.0
    %497 = vmatpush1.msra.mxu0 0.0
    %498 = vmatprep.subr.mxu0 0.0
    %499 = vmatpush1.msra.mxu0 0.0
    %500 = vmatprep.subr.mxu0 0.0
    %501 = vmatpush1.msra.mxu0 0.0
    %502 = vmatprep.subr.mxu0 0.0
    %503 = vmatpush1.msra.mxu0 0.0
    %504 = vmatprep.subr.mxu0 0.0
    %505 = vmatpush1.msra.mxu0 0.0
    %506 = vmatprep.subr.mxu0 0.0
    %507 = vmatpush1.msra.mxu0 0.0
    %508 = vmatprep.subr.mxu0 0.0
    %509 = vmatpush1.msra.mxu0 0.0
    %510 = vmatprep.subr.mxu0 0.0
    %511 = vmatpush1.msra.mxu0 0.0
    %512 = vmatprep.subr.mxu0 0.0
    %513 = vmatpush1.msra.mxu0 0.0
    %514 = vmatprep.subr.mxu0 0.0
    %515 = vmatpush1.msra.mxu0 0.0
    %516 = vmatprep.subr.mxu0 0.0
    %517 = vmatpush1.msra.mxu0 0.0
    %518 = vmatprep.subr.mxu0 0.0
    %519 = vmatpush1.msra.mxu0 %v231
    %520 = vmatprep.subr.mxu0 0.0
    %521 = vmatpush1.msra.mxu0 %v230
    %522 = vmatprep.subr.mxu0 0.0
    %523 = vmatpush1.msra.mxu0 %v229
    %524 = vmatprep.subr.mxu0 0.0
    %525 = vmatpush1.msra.mxu0 %v228
    %526 = vmatprep.subr.mxu0 0.0
    %527 = vmatpush2.msra.mxu0 0.0
    %528 = vmatprep.subr.mxu0 0.0
    %529 = vmatpush2.msra.mxu0 0.0
    %530 = vmatprep.subr.mxu0 0.0
    %531 = vmatpush2.msra.mxu0 0.0
    %532 = vmatprep.subr.mxu0 0.0
    %533 = vmatpush2.msra.mxu0 0.0
    %534 = vmatprep.subr.mxu0 0.0
    %535 = vmatpush2.msra.mxu0 0.0
    %536 = vmatprep.subr.mxu0 0.0
    %537 = vmatpush2.msra.mxu0 0.0
    %538 = vmatprep.subr.mxu0 0.0
    %539 = vmatpush2.msra.mxu0 0.0
    %540 = vmatprep.subr.mxu0 0.0
    %541 = vmatpush2.msra.mxu0 0.0
    %542 = vmatprep.subr.mxu0 0.0
    %543 = vmatpush2.msra.mxu0 0.0
    %544 = vmatprep.subr.mxu0 0.0
    %545 = vmatpush2.msra.mxu0 0.0
    %546 = vmatprep.subr.mxu0 0.0
    %547 = vmatpush2.msra.mxu0 0.0
    %548 = vmatprep.subr.mxu0 0.0
    %549 = vmatpush2.msra.mxu0 0.0
    %550 = vmatprep.subr.mxu0 0.0
    %551 = vmatpush2.msra.mxu0 0.0
    %552 = vmatprep.subr.mxu0 0.0
    %553 = vmatpush2.msra.mxu0 0.0
    %554 = vmatprep.subr.mxu0 0.0
    %555 = vmatpush2.msra.mxu0 0.0
    %556 = vmatprep.subr.mxu0 0.0
    %557 = vmatpush2.msra.mxu0 0.0
    %558 = vmatprep.mubr.f32.mxu0 0.0
    %559 = vmatmul.mubr.f32.gmra.mxu0 %v492
    %v560 = vpop.f32.mrf.mxu0
    %v561 = vadd.f32 0.0, %v560
    %v562 = vpop.f32.mrf.mxu0
    %563 = vdwg.mxu0
    %v565 = vrot.slane %v561, 6
    %v566 = vrot.slane %v561, 7
    %v567 = vrot.slane %v561, 1
    %v568 = vrot.slane %v561, 2
    %v569 = vrot.slane %v561, 3
    %v570 = vrot.slane %v561, 4
    %v571 = vrot.slane %v561, 5
    %v580 = vadd.f32 %v190, %v565
    %v581 = vadd.f32 %v195, %v566
    %v582 = vadd.f32 %v200, %v561
    %v583 = vadd.f32 %v205, %v567
    %v584 = vadd.f32 %v210, %v568
    %v585 = vadd.f32 %v215, %v569
    %v586 = vadd.f32 %v220, %v570
    %v587 = vadd.f32 %v225, %v571
    %v588 = vtanh.pop %v580
    %v589 = vtanh.pop %v581
    %v590 = vtanh.pop %v582
    %v591 = vtanh.pop %v583
    %v592 = vtanh.pop %v584
    %v593 = vtanh.pop %v585
    %v594 = vtanh.pop %v586
    %v595 = vtanh.pop %v587
    %v604 = vrot.slane %v588, 2
    %v605 = vrot.slane %v589, 1
    %v606 = vsel %vm346, %v605, %v604
    %v607 = vsel %vm349, %v590, %v606
    %v608 = vrot.slane %v591, 7
    %v609 = vsel %vm352, %v608, %v607
    %v610 = vrot.slane %v592, 6
    %v611 = vsel %vm355, %v610, %v609
    %v612 = vrot.slane %v593, 5
    %v613 = vsel %vm358, %v612, %v611
    %v614 = vrot.slane %v594, 4
    %v615 = vsel %vm361, %v614, %v613
    %v616 = vrot.slane %v595, 3
    %v617 = vsel %vm364, %v616, %v615
    %v618 = vsel %vm98, %v617, 0
    %620 = vmatprep.subr.mxu0 0.0
    %621 = vmatpush1.msra.mxu0 0.0
    %622 = vmatprep.subr.mxu0 0.0
    %623 = vmatpush1.msra.mxu0 0.0
    %624 = vmatprep.subr.mxu0 0.0
    %625 = vmatpush1.msra.mxu0 0.0
    %626 = vmatprep.subr.mxu0 0.0
    %627 = vmatpush1.msra.mxu0 0.0
    %628 = vmatprep.subr.mxu0 0.0
    %629 = vmatpush1.msra.mxu0 0.0
    %630 = vmatprep.subr.mxu0 0.0
    %631 = vmatpush1.msra.mxu0 0.0
    %632 = vmatprep.subr.mxu0 0.0
    %633 = vmatpush1.msra.mxu0 0.0
    %634 = vmatprep.subr.mxu0 0.0
    %635 = vmatpush1.msra.mxu0 0.0
    %636 = vmatprep.subr.mxu0 0.0
    %637 = vmatpush1.msra.mxu0 0.0
    %638 = vmatprep.subr.mxu0 0.0
    %639 = vmatpush1.msra.mxu0 0.0
    %640 = vmatprep.subr.mxu0 0.0
    %641 = vmatpush1.msra.mxu0 0.0
    %642 = vmatprep.subr.mxu0 0.0
    %643 = vmatpush1.msra.mxu0 0.0
    %644 = vmatprep.subr.mxu0 0.0
    %645 = vmatpush1.msra.mxu0 %v231
    %646 = vmatprep.subr.mxu0 0.0
    %647 = vmatpush1.msra.mxu0 %v230
    %648 = vmatprep.subr.mxu0 0.0
    %649 = vmatpush1.msra.mxu0 %v229
    %650 = vmatprep.subr.mxu0 0.0
    %651 = vmatpush1.msra.mxu0 %v228
    %652 = vmatprep.subr.mxu0 0.0
    %653 = vmatpush2.msra.mxu0 0.0
    %654 = vmatprep.subr.mxu0 0.0
    %655 = vmatpush2.msra.mxu0 0.0
    %656 = vmatprep.subr.mxu0 0.0
    %657 = vmatpush2.msra.mxu0 0.0
    %658 = vmatprep.subr.mxu0 0.0
    %659 = vmatpush2.msra.mxu0 0.0
    %660 = vmatprep.subr.mxu0 0.0
    %661 = vmatpush2.msra.mxu0 0.0
    %662 = vmatprep.subr.mxu0 0.0
    %663 = vmatpush2.msra.mxu0 0.0
    %664 = vmatprep.subr.mxu0 0.0
    %665 = vmatpush2.msra.mxu0 0.0
    %666 = vmatprep.subr.mxu0 0.0
    %667 = vmatpush2.msra.mxu0 0.0
    %668 = vmatprep.subr.mxu0 0.0
    %669 = vmatpush2.msra.mxu0 0.0
    %670 = vmatprep.subr.mxu0 0.0
    %671 = vmatpush2.msra.mxu0 0.0
    %672 = vmatprep.subr.mxu0 0.0
    %673 = vmatpush2.msra.mxu0 0.0
    %674 = vmatprep.subr.mxu0 0.0
    %675 = vmatpush2.msra.mxu0 0.0
    %676 = vmatprep.subr.mxu0 0.0
    %677 = vmatpush2.msra.mxu0 0.0
    %678 = vmatprep.subr.mxu0 0.0
    %679 = vmatpush2.msra.mxu0 0.0
    %680 = vmatprep.subr.mxu0 0.0
    %681 = vmatpush2.msra.mxu0 0.0
    %682 = vmatprep.subr.mxu0 0.0
    %683 = vmatpush2.msra.mxu0 0.0
    %684 = vmatprep.mubr.f32.mxu0 0.0
    %685 = vmatmul.mubr.f32.gmra.mxu0 %v618
    %v686 = vpop.f32.mrf.mxu0
    %v687 = vadd.f32 0.0, %v686
    %v688 = vpop.f32.mrf.mxu0
    %689 = vdwg.mxu0
    %v691 = vrot.slane %v687, 5
    %v692 = vrot.slane %v687, 6
    %v693 = vrot.slane %v687, 7
    %v694 = vrot.slane %v687, 1
    %v695 = vrot.slane %v687, 2
    %v696 = vrot.slane %v687, 3
    %v697 = vrot.slane %v687, 4
    %v706 = vadd.f32 %v190, %v691
    %v707 = vadd.f32 %v195, %v692
    %v708 = vadd.f32 %v200, %v693
    %v709 = vadd.f32 %v205, %v687
    %v710 = vadd.f32 %v210, %v694
    %v711 = vadd.f32 %v215, %v695
    %v712 = vadd.f32 %v220, %v696
    %v713 = vadd.f32 %v225, %v697
    %v714 = vtanh.pop %v706
    %v715 = vtanh.pop %v707
    %v716 = vtanh.pop %v708
    %v717 = vtanh.pop %v709
    %v718 = vtanh.pop %v710
    %v719 = vtanh.pop %v711
    %v720 = vtanh.pop %v712
    %v721 = vtanh.pop %v713
    %v730 = vrot.slane %v714, 3
    %v731 = vrot.slane %v715, 2
    %v732 = vsel %vm346, %v731, %v730
    %v733 = vrot.slane %v716, 1
    %v734 = vsel %vm349, %v733, %v732
    %v735 = vsel %vm352, %v717, %v734
    %v736 = vrot.slane %v718, 7
    %v737 = vsel %vm355, %v736, %v735
    %v738 = vrot.slane %v719, 6
    %v739 = vsel %vm358, %v738, %v737
    %v740 = vrot.slane %v720, 5
    %v741 = vsel %vm361, %v740, %v739
    %v742 = vrot.slane %v721, 4
    %v743 = vsel %vm364, %v742, %v741
    %v744 = vsel %vm98, %v743, 0
    %746 = vmatprep.subr.mxu0 0.0
    %747 = vmatpush1.msra.mxu0 0.0
    %748 = vmatprep.subr.mxu0 0.0
    %749 = vmatpush1.msra.mxu0 0.0
    %750 = vmatprep.subr.mxu0 0.0
    %751 = vmatpush1.msra.mxu0 0.0
    %752 = vmatprep.subr.mxu0 0.0
    %753 = vmatpush1.msra.mxu0 0.0
    %754 = vmatprep.subr.mxu0 0.0
    %755 = vmatpush1.msra.mxu0 0.0
    %756 = vmatprep.subr.mxu0 0.0
    %757 = vmatpush1.msra.mxu0 0.0
    %758 = vmatprep.subr.mxu0 0.0
    %759 = vmatpush1.msra.mxu0 0.0
    %760 = vmatprep.subr.mxu0 0.0
    %761 = vmatpush1.msra.mxu0 0.0
    %762 = vmatprep.subr.mxu0 0.0
    %763 = vmatpush1.msra.mxu0 0.0
    %764 = vmatprep.subr.mxu0 0.0
    %765 = vmatpush1.msra.mxu0 0.0
    %766 = vmatprep.subr.mxu0 0.0
    %767 = vmatpush1.msra.mxu0 0.0
    %768 = vmatprep.subr.mxu0 0.0
    %769 = vmatpush1.msra.mxu0 0.0
    %770 = vmatprep.subr.mxu0 0.0
    %771 = vmatpush1.msra.mxu0 %v231
    %772 = vmatprep.subr.mxu0 0.0
    %773 = vmatpush1.msra.mxu0 %v230
    %774 = vmatprep.subr.mxu0 0.0
    %775 = vmatpush1.msra.mxu0 %v229
    %776 = vmatprep.subr.mxu0 0.0
    %777 = vmatpush1.msra.mxu0 %v228
    %778 = vmatprep.subr.mxu0 0.0
    %779 = vmatpush2.msra.mxu0 0.0
    %780 = vmatprep.subr.mxu0 0.0
    %781 = vmatpush2.msra.mxu0 0.0
    %782 = vmatprep.subr.mxu0 0.0
    %783 = vmatpush2.msra.mxu0 0.0
    %784 = vmatprep.subr.mxu0 0.0
    %785 = vmatpush2.msra.mxu0 0.0
    %786 = vmatprep.subr.mxu0 0.0
    %787 = vmatpush2.msra.mxu0 0.0
    %788 = vmatprep.subr.mxu0 0.0
    %789 = vmatpush2.msra.mxu0 0.0
    %790 = vmatprep.subr.mxu0 0.0
    %791 = vmatpush2.msra.mxu0 0.0
    %792 = vmatprep.subr.mxu0 0.0
    %793 = vmatpush2.msra.mxu0 0.0
    %794 = vmatprep.subr.mxu0 0.0
    %795 = vmatpush2.msra.mxu0 0.0
    %796 = vmatprep.subr.mxu0 0.0
    %797 = vmatpush2.msra.mxu0 0.0
    %798 = vmatprep.subr.mxu0 0.0
    %799 = vmatpush2.msra.mxu0 0.0
    %800 = vmatprep.subr.mxu0 0.0
    %801 = vmatpush2.msra.mxu0 0.0
    %802 = vmatprep.subr.mxu0 0.0
    %803 = vmatpush2.msra.mxu0 0.0
    %804 = vmatprep.subr.mxu0 0.0
    %805 = vmatpush2.msra.mxu0 0.0
    %806 = vmatprep.subr.mxu0 0.0
    %807 = vmatpush2.msra.mxu0 0.0
    %808 = vmatprep.subr.mxu0 0.0
    %809 = vmatpush2.msra.mxu0 0.0
    %810 = vmatprep.mubr.f32.mxu0 0.0
    %811 = vmatmul.mubr.f32.gmra.mxu0 %v744
    %v812 = vpop.f32.mrf.mxu0
    %v813 = vadd.f32 0.0, %v812
    %v814 = vpop.f32.mrf.mxu0
    %815 = vdwg.mxu0
    %v817 = vrot.slane %v813, 4
    %v818 = vrot.slane %v813, 5
    %v819 = vrot.slane %v813, 6
    %v820 = vrot.slane %v813, 7
    %v821 = vrot.slane %v813, 1
    %v822 = vrot.slane %v813, 2
    %v823 = vrot.slane %v813, 3
    %v832 = vadd.f32 %v190, %v817
    %v833 = vadd.f32 %v195, %v818
    %v834 = vadd.f32 %v200, %v819
    %v835 = vadd.f32 %v205, %v820
    %v836 = vadd.f32 %v210, %v813
    %v837 = vadd.f32 %v215, %v821
    %v838 = vadd.f32 %v220, %v822
    %v839 = vadd.f32 %v225, %v823
    %v840 = vtanh.pop %v832
    %v841 = vtanh.pop %v833
    %v842 = vtanh.pop %v834
    %v843 = vtanh.pop %v835
    %v844 = vtanh.pop %v836
    %v845 = vtanh.pop %v837
    %v846 = vtanh.pop %v838
    %v847 = vtanh.pop %v839
    %v856 = vrot.slane %v840, 4
    %v857 = vrot.slane %v841, 3
    %v858 = vsel %vm346, %v857, %v856
    %v859 = vrot.slane %v842, 2
    %v860 = vsel %vm349, %v859, %v858
    %v861 = vrot.slane %v843, 1
    %v862 = vsel %vm352, %v861, %v860
    %v863 = vsel %vm355, %v844, %v862
    %v864 = vrot.slane %v845, 7
    %v865 = vsel %vm358, %v864, %v863
    %v866 = vrot.slane %v846, 6
    %v867 = vsel %vm361, %v866, %v865
    %v868 = vrot.slane %v847, 5
    %v869 = vsel %vm364, %v868, %v867
    %v870 = vsel %vm98, %v869, 0
    %872 = vmatprep.subr.mxu0 0.0
    %873 = vmatpush1.msra.mxu0 0.0
    %874 = vmatprep.subr.mxu0 0.0
    %875 = vmatpush1.msra.mxu0 0.0
    %876 = vmatprep.subr.mxu0 0.0
    %877 = vmatpush1.msra.mxu0 0.0
    %878 = vmatprep.subr.mxu0 0.0
    %879 = vmatpush1.msra.mxu0 0.0
    %880 = vmatprep.subr.mxu0 0.0
    %881 = vmatpush1.msra.mxu0 0.0
    %882 = vmatprep.subr.mxu0 0.0
    %883 = vmatpush1.msra.mxu0 0.0
    %884 = vmatprep.subr.mxu0 0.0
    %885 = vmatpush1.msra.mxu0 0.0
    %886 = vmatprep.subr.mxu0 0.0
    %887 = vmatpush1.msra.mxu0 0.0
    %888 = vmatprep.subr.mxu0 0.0
    %889 = vmatpush1.msra.mxu0 0.0
    %890 = vmatprep.subr.mxu0 0.0
    %891 = vmatpush1.msra.mxu0 0.0
    %892 = vmatprep.subr.mxu0 0.0
    %893 = vmatpush1.msra.mxu0 0.0
    %894 = vmatprep.subr.mxu0 0.0
    %895 = vmatpush1.msra.mxu0 0.0
    %896 = vmatprep.subr.mxu0 0.0
    %897 = vmatpush1.msra.mxu0 %v231
    %898 = vmatprep.subr.mxu0 0.0
    %899 = vmatpush1.msra.mxu0 %v230
    %900 = vmatprep.subr.mxu0 0.0
    %901 = vmatpush1.msra.mxu0 %v229
    %902 = vmatprep.subr.mxu0 0.0
    %903 = vmatpush1.msra.mxu0 %v228
    %904 = vmatprep.subr.mxu0 0.0
    %905 = vmatpush2.msra.mxu0 0.0
    %906 = vmatprep.subr.mxu0 0.0
    %907 = vmatpush2.msra.mxu0 0.0
    %908 = vmatprep.subr.mxu0 0.0
    %909 = vmatpush2.msra.mxu0 0.0
    %910 = vmatprep.subr.mxu0 0.0
    %911 = vmatpush2.msra.mxu0 0.0
    %912 = vmatprep.subr.mxu0 0.0
    %913 = vmatpush2.msra.mxu0 0.0
    %914 = vmatprep.subr.mxu0 0.0
    %915 = vmatpush2.msra.mxu0 0.0
    %916 = vmatprep.subr.mxu0 0.0
    %917 = vmatpush2.msra.mxu0 0.0
    %918 = vmatprep.subr.mxu0 0.0
    %919 = vmatpush2.msra.mxu0 0.0
    %920 = vmatprep.subr.mxu0 0.0
    %921 = vmatpush2.msra.mxu0 0.0
    %922 = vmatprep.subr.mxu0 0.0
    %923 = vmatpush2.msra.mxu0 0.0
    %924 = vmatprep.subr.mxu0 0.0
    %925 = vmatpush2.msra.mxu0 0.0
    %926 = vmatprep.subr.mxu0 0.0
    %927 = vmatpush2.msra.mxu0 0.0
    %928 = vmatprep.subr.mxu0 0.0
    %929 = vmatpush2.msra.mxu0 0.0
    %930 = vmatprep.subr.mxu0 0.0
    %931 = vmatpush2.msra.mxu0 0.0
    %932 = vmatprep.subr.mxu0 0.0
    %933 = vmatpush2.msra.mxu0 0.0
    %934 = vmatprep.subr.mxu0 0.0
    %935 = vmatpush2.msra.mxu0 0.0
    %936 = vmatprep.mubr.f32.mxu0 0.0
    %937 = vmatmul.mubr.f32.gmra.mxu0 %v870
    %v938 = vpop.f32.mrf.mxu0
    %v939 = vadd.f32 0.0, %v938
    %v940 = vpop.f32.mrf.mxu0
    %941 = vdwg.mxu0
    %v943 = vrot.slane %v939, 3
    %v944 = vrot.slane %v939, 4
    %v945 = vrot.slane %v939, 5
    %v946 = vrot.slane %v939, 6
    %v947 = vrot.slane %v939, 7
    %v948 = vrot.slane %v939, 1
    %v949 = vrot.slane %v939, 2
    %v958 = vadd.f32 %v190, %v943
    %v959 = vadd.f32 %v195, %v944
    %v960 = vadd.f32 %v200, %v945
    %v961 = vadd.f32 %v205, %v946
    %v962 = vadd.f32 %v210, %v947
    %v963 = vadd.f32 %v215, %v939
    %v964 = vadd.f32 %v220, %v948
    %v965 = vadd.f32 %v225, %v949
    %v966 = vtanh.pop %v958
    %v967 = vtanh.pop %v959
    %v968 = vtanh.pop %v960
    %v969 = vtanh.pop %v961
    %v970 = vtanh.pop %v962
    %v971 = vtanh.pop %v963
    %v972 = vtanh.pop %v964
    %v973 = vtanh.pop %v965
    %v982 = vrot.slane %v966, 5
    %v983 = vrot.slane %v967, 4
    %v984 = vsel %vm346, %v983, %v982
    %v985 = vrot.slane %v968, 3
    %v986 = vsel %vm349, %v985, %v984
    %v987 = vrot.slane %v969, 2
    %v988 = vsel %vm352, %v987, %v986
    %v989 = vrot.slane %v970, 1
    %v990 = vsel %vm355, %v989, %v988
    %v991 = vsel %vm358, %v971, %v990
    %v992 = vrot.slane %v972, 7
    %v993 = vsel %vm361, %v992, %v991
    %v994 = vrot.slane %v973, 6
    %v995 = vsel %vm364, %v994, %v993
    %v996 = vsel %vm98, %v995, 0
    %998 = vmatprep.subr.mxu0 0.0
    %999 = vmatpush1.msra.mxu0 0.0
    %1000 = vmatprep.subr.mxu0 0.0
    %1001 = vmatpush1.msra.mxu0 0.0
    %1002 = vmatprep.subr.mxu0 0.0
    %1003 = vmatpush1.msra.mxu0 0.0
    %1004 = vmatprep.subr.mxu0 0.0
    %1005 = vmatpush1.msra.mxu0 0.0
    %1006 = vmatprep.subr.mxu0 0.0
    %1007 = vmatpush1.msra.mxu0 0.0
    %1008 = vmatprep.subr.mxu0 0.0
    %1009 = vmatpush1.msra.mxu0 0.0
    %1010 = vmatprep.subr.mxu0 0.0
    %1011 = vmatpush1.msra.mxu0 0.0
    %1012 = vmatprep.subr.mxu0 0.0
    %1013 = vmatpush1.msra.mxu0 0.0
    %1014 = vmatprep.subr.mxu0 0.0
    %1015 = vmatpush1.msra.mxu0 0.0
    %1016 = vmatprep.subr.mxu0 0.0
    %1017 = vmatpush1.msra.mxu0 0.0
    %1018 = vmatprep.subr.mxu0 0.0
    %1019 = vmatpush1.msra.mxu0 0.0
    %1020 = vmatprep.subr.mxu0 0.0
    %1021 = vmatpush1.msra.mxu0 0.0
    %1022 = vmatprep.subr.mxu0 0.0
    %1023 = vmatpush1.msra.mxu0 %v231
    %1024 = vmatprep.subr.mxu0 0.0
    %1025 = vmatpush1.msra.mxu0 %v230
    %1026 = vmatprep.subr.mxu0 0.0
    %1027 = vmatpush1.msra.mxu0 %v229
    %1028 = vmatprep.subr.mxu0 0.0
    %1029 = vmatpush1.msra.mxu0 %v228
    %1030 = vmatprep.subr.mxu0 0.0
    %1031 = vmatpush2.msra.mxu0 0.0
    %1032 = vmatprep.subr.mxu0 0.0
    %1033 = vmatpush2.msra.mxu0 0.0
    %1034 = vmatprep.subr.mxu0 0.0
    %1035 = vmatpush2.msra.mxu0 0.0
    %1036 = vmatprep.subr.mxu0 0.0
    %1037 = vmatpush2.msra.mxu0 0.0
    %1038 = vmatprep.subr.mxu0 0.0
    %1039 = vmatpush2.msra.mxu0 0.0
    %1040 = vmatprep.subr.mxu0 0.0
    %1041 = vmatpush2.msra.mxu0 0.0
    %1042 = vmatprep.subr.mxu0 0.0
    %1043 = vmatpush2.msra.mxu0 0.0
    %1044 = vmatprep.subr.mxu0 0.0
    %1045 = vmatpush2.msra.mxu0 0.0
    %1046 = vmatprep.subr.mxu0 0.0
    %1047 = vmatpush2.msra.mxu0 0.0
    %1048 = vmatprep.subr.mxu0 0.0
    %1049 = vmatpush2.msra.mxu0 0.0
    %1050 = vmatprep.subr.mxu0 0.0
    %1051 = vmatpush2.msra.mxu0 0.0
    %1052 = vmatprep.subr.mxu0 0.0
    %1053 = vmatpush2.msra.mxu0 0.0
    %1054 = vmatprep.subr.mxu0 0.0
    %1055 = vmatpush2.msra.mxu0 0.0
    %1056 = vmatprep.subr.mxu0 0.0
    %1057 = vmatpush2.msra.mxu0 0.0
    %1058 = vmatprep.subr.mxu0 0.0
    %1059 = vmatpush2.msra.mxu0 0.0
    %1060 = vmatprep.subr.mxu0 0.0
    %1061 = vmatpush2.msra.mxu0 0.0
    %1062 = vmatprep.mubr.f32.mxu0 0.0
    %1063 = vmatmul.mubr.f32.gmra.mxu0 %v996
    %v1064 = vpop.f32.mrf.mxu0
    %v1065 = vadd.f32 0.0, %v1064
    %v1066 = vpop.f32.mrf.mxu0
    %1067 = vdwg.mxu0
    %v1069 = vrot.slane %v1065, 2
    %v1070 = vrot.slane %v1065, 3
    %v1071 = vrot.slane %v1065, 4
    %v1072 = vrot.slane %v1065, 5
    %v1073 = vrot.slane %v1065, 6
    %v1074 = vrot.slane %v1065, 7
    %v1075 = vrot.slane %v1065, 1
    %v1084 = vadd.f32 %v190, %v1069
    %v1085 = vadd.f32 %v195, %v1070
    %v1086 = vadd.f32 %v200, %v1071
    %v1087 = vadd.f32 %v205, %v1072
    %v1088 = vadd.f32 %v210, %v1073
    %v1089 = vadd.f32 %v215, %v1074
    %v1090 = vadd.f32 %v220, %v1065
    %v1091 = vadd.f32 %v225, %v1075
    %v1092 = vtanh.pop %v1084
    %v1093 = vtanh.pop %v1085
    %v1094 = vtanh.pop %v1086
    %v1095 = vtanh.pop %v1087
    %v1096 = vtanh.pop %v1088
    %v1097 = vtanh.pop %v1089
    %v1098 = vtanh.pop %v1090
    %v1099 = vtanh.pop %v1091
    %v1108 = vrot.slane %v1092, 6
    %v1109 = vrot.slane %v1093, 5
    %v1110 = vsel %vm346, %v1109, %v1108
    %v1111 = vrot.slane %v1094, 4
    %v1112 = vsel %vm349, %v1111, %v1110
    %v1113 = vrot.slane %v1095, 3
    %v1114 = vsel %vm352, %v1113, %v1112
    %v1115 = vrot.slane %v1096, 2
    %v1116 = vsel %vm355, %v1115, %v1114
    %v1117 = vrot.slane %v1097, 1
    %v1118 = vsel %vm358, %v1117, %v1116
    %v1119 = vsel %vm361, %v1098, %v1118
    %v1120 = vrot.slane %v1099, 7
    %v1121 = vsel %vm364, %v1120, %v1119
    %v1122 = vsel %vm98, %v1121, 0
    %1124 = vmatprep.subr.mxu0 0.0
    %1125 = vmatpush1.msra.mxu0 0.0
    %1126 = vmatprep.subr.mxu0 0.0
    %1127 = vmatpush1.msra.mxu0 0.0
    %1128 = vmatprep.subr.mxu0 0.0
    %1129 = vmatpush1.msra.mxu0 0.0
    %1130 = vmatprep.subr.mxu0 0.0
    %1131 = vmatpush1.msra.mxu0 0.0
    %1132 = vmatprep.subr.mxu0 0.0
    %1133 = vmatpush1.msra.mxu0 0.0
    %1134 = vmatprep.subr.mxu0 0.0
    %1135 = vmatpush1.msra.mxu0 0.0
    %1136 = vmatprep.subr.mxu0 0.0
    %1137 = vmatpush1.msra.mxu0 0.0
    %1138 = vmatprep.subr.mxu0 0.0
    %1139 = vmatpush1.msra.mxu0 0.0
    %1140 = vmatprep.subr.mxu0 0.0
    %1141 = vmatpush1.msra.mxu0 0.0
    %1142 = vmatprep.subr.mxu0 0.0
    %1143 = vmatpush1.msra.mxu0 0.0
    %1144 = vmatprep.subr.mxu0 0.0
    %1145 = vmatpush1.msra.mxu0 0.0
    %1146 = vmatprep.subr.mxu0 0.0
    %1147 = vmatpush1.msra.mxu0 0.0
    %1148 = vmatprep.subr.mxu0 0.0
    %1149 = vmatpush1.msra.mxu0 %v231
    %1150 = vmatprep.subr.mxu0 0.0
    %1151 = vmatpush1.msra.mxu0 %v230
    %1152 = vmatprep.subr.mxu0 0.0
    %1153 = vmatpush1.msra.mxu0 %v229
    %1154 = vmatprep.subr.mxu0 0.0
    %1155 = vmatpush1.msra.mxu0 %v228
    %1156 = vmatprep.subr.mxu0 0.0
    %1157 = vmatpush2.msra.mxu0 0.0
    %1158 = vmatprep.subr.mxu0 0.0
    %1159 = vmatpush2.msra.mxu0 0.0
    %1160 = vmatprep.subr.mxu0 0.0
    %1161 = vmatpush2.msra.mxu0 0.0
    %1162 = vmatprep.subr.mxu0 0.0
    %1163 = vmatpush2.msra.mxu0 0.0
    %1164 = vmatprep.subr.mxu0 0.0
    %1165 = vmatpush2.msra.mxu0 0.0
    %1166 = vmatprep.subr.mxu0 0.0
    %1167 = vmatpush2.msra.mxu0 0.0
    %1168 = vmatprep.subr.mxu0 0.0
    %1169 = vmatpush2.msra.mxu0 0.0
    %1170 = vmatprep.subr.mxu0 0.0
    %1171 = vmatpush2.msra.mxu0 0.0
    %1172 = vmatprep.subr.mxu0 0.0
    %1173 = vmatpush2.msra.mxu0 0.0
    %1174 = vmatprep.subr.mxu0 0.0
    %1175 = vmatpush2.msra.mxu0 0.0
    %1176 = vmatprep.subr.mxu0 0.0
    %1177 = vmatpush2.msra.mxu0 0.0
    %1178 = vmatprep.subr.mxu0 0.0
    %1179 = vmatpush2.msra.mxu0 0.0
    %1180 = vmatprep.subr.mxu0 0.0
    %1181 = vmatpush2.msra.mxu0 0.0
    %1182 = vmatprep.subr.mxu0 0.0
    %1183 = vmatpush2.msra.mxu0 0.0
    %1184 = vmatprep.subr.mxu0 0.0
    %1185 = vmatpush2.msra.mxu0 0.0
    %1186 = vmatprep.subr.mxu0 0.0
    %1187 = vmatpush2.msra.mxu0 0.0
    %1188 = vmatprep.mubr.f32.mxu0 0.0
    %1189 = vmatmul.mubr.f32.gmra.mxu0 %v1122
    %v1190 = vpop.f32.mrf.mxu0
    %v1191 = vadd.f32 0.0, %v1190
    %v1192 = vpop.f32.mrf.mxu0
    %1193 = vdwg.mxu0
    %v1195 = vrot.slane %v1191, 1
    %v1196 = vrot.slane %v1191, 2
    %v1197 = vrot.slane %v1191, 3
    %v1198 = vrot.slane %v1191, 4
    %v1199 = vrot.slane %v1191, 5
    %v1200 = vrot.slane %v1191, 6
    %v1201 = vrot.slane %v1191, 7
    %v1210 = vadd.f32 %v190, %v1195
    %v1211 = vadd.f32 %v195, %v1196
    %v1212 = vadd.f32 %v200, %v1197
    %v1213 = vadd.f32 %v205, %v1198
    %v1214 = vadd.f32 %v210, %v1199
    %v1215 = vadd.f32 %v215, %v1200
    %v1216 = vadd.f32 %v220, %v1201
    %v1217 = vadd.f32 %v225, %v1191
    %v1218 = vtanh.pop %v1210
    %v1219 = vtanh.pop %v1211
    %v1220 = vtanh.pop %v1212
    %v1221 = vtanh.pop %v1213
    %v1222 = vtanh.pop %v1214
    %v1223 = vtanh.pop %v1215
    %v1224 = vtanh.pop %v1216
    %v1225 = vtanh.pop %v1217
    %v1226 = vld [vmem:[#allocation8] sm:$0xff]
    %v1227 = vld [vmem:[#allocation8 + $0x8] sm:$0xff]
    %v1228 = vld [vmem:[#allocation8 + $0x10] sm:$0xff]
    %v1229 = vld [vmem:[#allocation8 + $0x18] sm:$0xff]
    %v1230 = vld [vmem:[%s5] sm:$0x1]
    %v1232 = vlaneseq
    %v1233 = vshrl.u32 %v1232, 7
    %v1234 = vsub.s32 0, %v1233
    %v1235 = vrot.slane %v1230, %v1234
    %v1245 = vrot.slane %v1218, 7
    %v1246 = vrot.slane %v1219, 6
    %v1247 = vsel %vm346, %v1246, %v1245
    %v1248 = vrot.slane %v1220, 5
    %v1249 = vsel %vm349, %v1248, %v1247
    %v1250 = vrot.slane %v1221, 4
    %v1251 = vsel %vm352, %v1250, %v1249
    %v1252 = vrot.slane %v1222, 3
    %v1253 = vsel %vm355, %v1252, %v1251
    %v1254 = vrot.slane %v1223, 2
    %v1255 = vsel %vm358, %v1254, %v1253
    %v1256 = vrot.slane %v1224, 1
    %v1257 = vsel %vm361, %v1256, %v1255
    %v1258 = vsel %vm364, %v1225, %v1257
    %v1259 = vsel %vm98, %v1258, 0
    %1261 = vmatprep.subr.mxu0 0.0
    %1262 = vmatpush1.msra.mxu0 0.0
    %1263 = vmatprep.subr.mxu0 0.0
    %1264 = vmatpush1.msra.mxu0 0.0
    %1265 = vmatprep.subr.mxu0 0.0
    %1266 = vmatpush1.msra.mxu0 0.0
    %1267 = vmatprep.subr.mxu0 0.0
    %1268 = vmatpush1.msra.mxu0 0.0
    %1269 = vmatprep.subr.mxu0 0.0
    %1270 = vmatpush1.msra.mxu0 0.0
    %1271 = vmatprep.subr.mxu0 0.0
    %1272 = vmatpush1.msra.mxu0 0.0
    %1273 = vmatprep.subr.mxu0 0.0
    %1274 = vmatpush1.msra.mxu0 0.0
    %1275 = vmatprep.subr.mxu0 0.0
    %1276 = vmatpush1.msra.mxu0 0.0
    %1277 = vmatprep.subr.mxu0 0.0
    %1278 = vmatpush1.msra.mxu0 0.0
    %1279 = vmatprep.subr.mxu0 0.0
    %1280 = vmatpush1.msra.mxu0 0.0
    %1281 = vmatprep.subr.mxu0 0.0
    %1282 = vmatpush1.msra.mxu0 0.0
    %1283 = vmatprep.subr.mxu0 0.0
    %1284 = vmatpush1.msra.mxu0 0.0
    %1285 = vmatprep.subr.mxu0 0.0
    %1286 = vmatpush1.msra.mxu0 %v1229
    %1287 = vmatprep.subr.mxu0 0.0
    %1288 = vmatpush1.msra.mxu0 %v1228
    %1289 = vmatprep.subr.mxu0 0.0
    %1290 = vmatpush1.msra.mxu0 %v1227
    %1291 = vmatprep.subr.mxu0 0.0
    %1292 = vmatpush1.msra.mxu0 %v1226
    %1293 = vmatprep.subr.mxu0 0.0
    %1294 = vmatpush2.msra.mxu0 0.0
    %1295 = vmatprep.subr.mxu0 0.0
    %1296 = vmatpush2.msra.mxu0 0.0
    %1297 = vmatprep.subr.mxu0 0.0
    %1298 = vmatpush2.msra.mxu0 0.0
    %1299 = vmatprep.subr.mxu0 0.0
    %1300 = vmatpush2.msra.mxu0 0.0
    %1301 = vmatprep.subr.mxu0 0.0
    %1302 = vmatpush2.msra.mxu0 0.0
    %1303 = vmatprep.subr.mxu0 0.0
    %1304 = vmatpush2.msra.mxu0 0.0
    %1305 = vmatprep.subr.mxu0 0.0
    %1306 = vmatpush2.msra.mxu0 0.0
    %1307 = vmatprep.subr.mxu0 0.0
    %1308 = vmatpush2.msra.mxu0 0.0
    %1309 = vmatprep.subr.mxu0 0.0
    %1310 = vmatpush2.msra.mxu0 0.0
    %1311 = vmatprep.subr.mxu0 0.0
    %1312 = vmatpush2.msra.mxu0 0.0
    %1313 = vmatprep.subr.mxu0 0.0
    %1314 = vmatpush2.msra.mxu0 0.0
    %1315 = vmatprep.subr.mxu0 0.0
    %1316 = vmatpush2.msra.mxu0 0.0
    %1317 = vmatprep.subr.mxu0 0.0
    %1318 = vmatpush2.msra.mxu0 0.0
    %1319 = vmatprep.subr.mxu0 0.0
    %1320 = vmatpush2.msra.mxu0 0.0
    %1321 = vmatprep.subr.mxu0 0.0
    %1322 = vmatpush2.msra.mxu0 0.0
    %1323 = vmatprep.subr.mxu0 0.0
    %1324 = vmatpush2.msra.mxu0 0.0
    %1325 = vmatprep.mubr.f32.mxu0 0.0
    %1326 = vmatmul.mubr.f32.gmra.mxu0 %v1259
    %v1327 = vpop.f32.mrf.mxu0
    %v1328 = vadd.f32 %v1235, %v1327
    %v1329 = vpop.f32.mrf.mxu0
    %1330 = vdwg.mxu0
    %1331 = vst.msk [vmem:[#allocation10] sm:$0xff] %vm98, %v1328
    // Predicated region
    $region42: #{tpu_custom_call.1} parent=1 // pred_check
      _
    $region43: #{tpu_custom_call.1} parent=1 // pred_check_branch
      %1333 = sbr.rel (0) target = $region45
    $region44: #{tpu_custom_call.1} parent=1 // pred_region
      %s1335 = ssub.s32 128, 128
      %1336 = vsyncadd [#allocation4], %s1335
      %s1338 = sshll.u32 [#allocation10], 4
      %s1339 = int_to_ptr.vmem [resolvable:$true] %s1338
      %1341 = dma.vmem_to_hbm [thread:$0]  %s1339, 128, %s6, [#allocation4]
    $region45: #{tpu_custom_call.1} parent=1 // pred_fallthru
      _
    // Predicated region
    $region46: #{tpu_custom_call.1} parent=1 // pred_check
      _
    $region47: #{tpu_custom_call.1} parent=1 // pred_check_branch
      %1343 = sbr.rel (0) target = $region49
    $region48: #{tpu_custom_call.1} parent=1 // pred_region
      %1344 = dma.done [#allocation4], 128
    $region49: #{tpu_custom_call.1} parent=1 // pred_fallthru
      _
    %1345 = vsyncpa [#allocation3], 1
    %1346 = vsyncpa [#allocation6], 1
    %1347 = vsyncpa [#allocation9], 1
    %1348 = vsyncpa [#allocation4], 1

</llo_original>
